<compile_context>
chip_gen: v6e
topology: v6e:2x2x1
jax: 0.10.0
libtpu: 0.0.40
codegen_flags: <defaults>
</compile_context>

<pallas_src>
import jax
import jax.numpy as jnp
from jax.experimental import pallas as pl
from jax.experimental.pallas import tpu as pltpu

NEG_SLOPE = 0.01  # F.leaky_relu default


def _leaky_relu(x):
    # max(x, 0.01*x) is exactly leaky_relu for slope in (0,1).
    return jnp.maximum(x, NEG_SLOPE * x)


def _round_up(x, m):
    return ((x + m - 1) // m) * m


def mlp_kernel(a_ref, b_ref, pos_ref,
               w1a_ref, w1b_ref, w1p_ref, b1_ref,
               w2_ref, b2_ref,
               w3_ref, b3_ref,
               w4_ref, b4_ref,
               out_ref):
    # a/b: (TB, N) f32, pos: (TB, 1) f32.  Weights bf16, biases f32.
    # Cast inputs to bf16 in-kernel (VPU, hidden under MXU) -- no wrapper pre-pass.
    a = a_ref[...].astype(jnp.bfloat16)
    b = b_ref[...].astype(jnp.bfloat16)
    pos = pos_ref[...]                                   # (TB, 1) f32

    # Layer 1: fused concat -> split matmuls (MXU) + pos broadcast (VPU), f32 accumulate.
    h = (jnp.dot(a, w1a_ref[...], preferred_element_type=jnp.float32)
         + jnp.dot(b, w1b_ref[...], preferred_element_type=jnp.float32)
         + pos * w1p_ref[...].astype(jnp.float32)        # (TB,1)*(1,128) -> (TB,128)
         + b1_ref[...])
    h = _leaky_relu(h).astype(jnp.bfloat16)              # (TB, 128) bf16 intermediate

    h = jnp.dot(h, w2_ref[...], preferred_element_type=jnp.float32) + b2_ref[...]
    h = _leaky_relu(h).astype(jnp.bfloat16)              # (TB, 128)

    h = jnp.dot(h, w3_ref[...], preferred_element_type=jnp.float32) + b3_ref[...]
    h = _leaky_relu(h).astype(jnp.bfloat16)              # (TB, 128) (64 real + 64 zero pad)

    # Layer 4: narrow unpadded output (TB, oned_size), f32 store.
    out_ref[...] = (jnp.dot(h, w4_ref[...], preferred_element_type=jnp.float32)
                    + b4_ref[...])


def simple_connected_multiple_batched(a, b, pos, prepared, *, batch_tile=2048):
    """Batched forward: a (B, N), b (B, N), pos (B, 1) -> (B, oned_size) f32."""
    w1a, w1b, w1p, b1, w2, b2, w3, b3, w4, b4 = prepared
    B, N = a.shape
    oned_size = w4.shape[1]

    # Big tile to amortize ~0.35us/grid-step overhead, but keep >= 2 grid steps when
    # possible so the "parallel" batch axis uses both TensorCores on v7x.
    TB = int(min(batch_tile, max(8, _round_up((B + 1) // 2, 8))))
    Bp = _round_up(B, TB)

    def pad_rows(x):
        x = x.astype(jnp.float32)
        if Bp != B:
            x = jnp.pad(x, ((0, Bp - B), (0, 0)))
        return x

    a_p, b_p, pos_p = pad_rows(a), pad_rows(b), pad_rows(pos)

    row_spec = lambda w: pl.BlockSpec((TB, w), lambda i: (i, 0))
    # Weights/biases: constant index_map -> stay resident in VMEM across grid steps.
    full_spec = lambda arr: pl.BlockSpec(arr.shape, lambda i: (0, 0))

    operands = (a_p, b_p, pos_p, w1a, w1b, w1p, b1, w2, b2, w3, b3, w4, b4)
    in_specs = [row_spec(N), row_spec(N), row_spec(1)] + [full_spec(o) for o in operands[3:]]

    out = pl.pallas_call(
        mlp_kernel,
        out_shape=jax.ShapeDtypeStruct((Bp, oned_size), jnp.float32),
        grid=(Bp // TB,),
        in_specs=in_specs,
        out_specs=pl.BlockSpec((TB, oned_size), lambda i: (i, 0)),
        compiler_params=pltpu.CompilerParams(
            dimension_semantics=("parallel",)),
    )(*operands)

    return out if Bp == B else out[:B]


def simple_connected_multiple(a, b, pos, prepared):
    """Single-sample forward matching the torch module: (oned_size,)."""
    out = simple_connected_multiple_batched(
        a.reshape(1, -1), b.reshape(1, -1), pos.reshape(1, -1), prepared)
    return out[0]


def init_params(key, oned_size):
    """f32 params mirroring the torch module (weights stored as (in, out)).

    Weights: xavier_uniform; biases: PyTorch Linear default uniform(+-1/sqrt(fan_in))."""
    dims = [(oned_size * 2 + 1, 128), (128, 128), (128, 64), (64, oned_size)]
    params = []
    for (fan_in, fan_out) in dims:
        key, kw, kb = jax.random.split(key, 3)
        limit = jnp.sqrt(6.0 / (fan_in + fan_out))
        w = jax.random.uniform(kw, (fan_in, fan_out), jnp.float32, -limit, limit)
        blim = 1.0 / jnp.sqrt(float(fan_in))
        bias = jax.random.uniform(kb, (1, fan_out), jnp.float32, -blim, blim)
        params.append((w, bias))
    return params


def prepare_params(params):
    """Split layer1 rows (a/b/pos), zero-pad layer3 width / layer4 input rows to 128,
    keep layer4 output UNPADDED (narrow f32 output stream), cast weights to bf16."""
    (w1, b1), (w2, b2), (w3, b3), (w4, b4) = params
    n = (w1.shape[0] - 1) // 2
    w1a, w1b, w1p = w1[:n], w1[n:2 * n], w1[2 * n:]          # (N,128),(N,128),(1,128)

    h3, h3p = w3.shape[1], _round_up(w3.shape[1], 128)        # 64 -> 128
    w3p = jnp.pad(w3, ((0, 0), (0, h3p - h3)))
    b3p = jnp.pad(b3, ((0, 0), (0, h3p - h3)))
    w4p = jnp.pad(w4, ((0, h3p - h3), (0, 0)))                # pad input rows only

    bf = lambda x: x.astype(jnp.bfloat16)
    return (bf(w1a), bf(w1b), bf(w1p), b1.astype(jnp.float32),
            bf(w2), b2.astype(jnp.float32),
            bf(w3p), b3p.astype(jnp.float32),
            bf(w4p), b4.astype(jnp.float32))


def reference_forward(a, b, pos, params):
    """Plain-JAX f32 reference (identical to the torch forward)."""
    (w1, b1), (w2, b2), (w3, b3), (w4, b4) = params
    x = jnp.concatenate([a.reshape(-1), b.reshape(-1), pos.reshape(-1)]).reshape(1, -1)
    lr = lambda t: jnp.where(t > 0, t, NEG_SLOPE * t)
    h = lr(x @ w1 + b1)
    h = lr(h @ w2 + b2)
    h = lr(h @ w3 + b3)
    return (h @ w4 + b4).reshape(-1)


if __name__ == "__main__":
    oned_size = 16
    batch = 8

    key = jax.random.PRNGKey(0)
    key, ka, kb, kp = jax.random.split(key, 4)
    a_b = jax.random.normal(ka, (batch, oned_size), jnp.float32)
    b_b = jax.random.normal(kb, (batch, oned_size), jnp.float32)
    pos_b = jax.random.normal(kp, (batch, 1), jnp.float32)

    params = init_params(key, oned_size)          # f32 (torch-equivalent)
    prepared = prepare_params(params)             # split/padded bf16 kernel params

    # --- single-sample path (module semantics) ---
    out1 = simple_connected_multiple(a_b[0], b_b[0], pos_b[0], prepared)
    jax.block_until_ready(out1)
    ref1 = reference_forward(a_b[0], b_b[0], pos_b[0], params)
    assert out1.shape == (oned_size,)
    assert jnp.allclose(out1, ref1, atol=5e-2, rtol=5e-2), (
        float(jnp.max(jnp.abs(out1 - ref1))))

    # --- batched path (B multiple of tile) ---
    out_b = simple_connected_multiple_batched(a_b, b_b, pos_b, prepared)
    jax.block_until_ready(out_b)
    ref_b = jnp.stack([reference_forward(a_b[i], b_b[i], pos_b[i], params)
                       for i in range(batch)])
    assert out_b.shape == (batch, oned_size)
    assert jnp.allclose(out_b, ref_b, atol=5e-2, rtol=5e-2), (
        float(jnp.max(jnp.abs(out_b - ref_b))))

    # --- batched path with row padding (B not a multiple of the tile) ---
    batch2 = 19
    key, ka2, kb2, kp2 = jax.random.split(key, 4)
    a2 = jax.random.normal(ka2, (batch2, oned_size), jnp.float32)
    b2 = jax.random.normal(kb2, (batch2, oned_size), jnp.float32)
    p2 = jax.random.normal(kp2, (batch2, 1), jnp.float32)
    out2 = simple_connected_multiple_batched(a2, b2, p2, prepared)
    jax.block_until_ready(out2)
    ref2 = jnp.stack([reference_forward(a2[i], b2[i], p2[i], params)
                      for i in range(batch2)])
    assert out2.shape == (batch2, oned_size)
    assert jnp.allclose(out2, ref2, atol=5e-2, rtol=5e-2), (
        float(jnp.max(jnp.abs(out2 - ref2))))

    print("KERNEL_OK")
</pallas_src>

<mosaic_0001>
module attributes {stable_mosaic.version = 11 : i64} {
  func.func @mlp_kernel(%arg0: i32, %arg1: memref<8x16xf32, #tpu.memory_space<vmem>>, %arg2: memref<8x16xf32, #tpu.memory_space<vmem>>, %arg3: memref<8x1xf32, #tpu.memory_space<vmem>>, %arg4: memref<16x128xbf16, #tpu.memory_space<vmem>>, %arg5: memref<16x128xbf16, #tpu.memory_space<vmem>>, %arg6: memref<1x128xbf16, #tpu.memory_space<vmem>>, %arg7: memref<1x128xf32, #tpu.memory_space<vmem>>, %arg8: memref<128x128xbf16, #tpu.memory_space<vmem>>, %arg9: memref<1x128xf32, #tpu.memory_space<vmem>>, %arg10: memref<128x128xbf16, #tpu.memory_space<vmem>>, %arg11: memref<1x128xf32, #tpu.memory_space<vmem>>, %arg12: memref<128x16xbf16, #tpu.memory_space<vmem>>, %arg13: memref<1x16xf32, #tpu.memory_space<vmem>>, %arg14: memref<8x16xf32, #tpu.memory_space<vmem>>) attributes {dimension_semantics = [#tpu.dimension_semantics<parallel>], iteration_bounds = array<i64: 1>, scalar_prefetch = 0 : i64, scratch_operands = 0 : i64, tpu.core_type = #tpu.core_type<tc>, window_params = [{transform_indices = @transform_0, window_bounds = array<i64: 8, 16>}, {transform_indices = @transform_1, window_bounds = array<i64: 8, 16>}, {transform_indices = @transform_2, window_bounds = array<i64: 8, 1>}, {pipeline_mode = #tpu.pipeline_mode<synchronous>, transform_indices = @transform_3, window_bounds = array<i64: 16, 128>}, {pipeline_mode = #tpu.pipeline_mode<synchronous>, transform_indices = @transform_4, window_bounds = array<i64: 16, 128>}, {pipeline_mode = #tpu.pipeline_mode<synchronous>, transform_indices = @transform_5, window_bounds = array<i64: 1, 128>}, {pipeline_mode = #tpu.pipeline_mode<synchronous>, transform_indices = @transform_6, window_bounds = array<i64: 1, 128>}, {pipeline_mode = #tpu.pipeline_mode<synchronous>, transform_indices = @transform_7, window_bounds = array<i64: 128, 128>}, {pipeline_mode = #tpu.pipeline_mode<synchronous>, transform_indices = @transform_8, window_bounds = array<i64: 1, 128>}, {pipeline_mode = #tpu.pipeline_mode<synchronous>, transform_indices = @transform_9, window_bounds = array<i64: 128, 128>}, {pipeline_mode = #tpu.pipeline_mode<synchronous>, transform_indices = @transform_10, window_bounds = array<i64: 1, 128>}, {pipeline_mode = #tpu.pipeline_mode<synchronous>, transform_indices = @transform_11, window_bounds = array<i64: 128, 16>}, {pipeline_mode = #tpu.pipeline_mode<synchronous>, transform_indices = @transform_12, window_bounds = array<i64: 1, 16>}, {transform_indices = @transform_13, window_bounds = array<i64: 8, 16>}]} {
    %c0 = arith.constant 0 : index
    %c0_0 = arith.constant 0 : index
    %0 = vector.load %arg1[%c0, %c0_0] : memref<8x16xf32, #tpu.memory_space<vmem>>, vector<8x16xf32>
    %1 = arith.truncf %0 : vector<8x16xf32> to vector<8x16xbf16>
    %c0_1 = arith.constant 0 : index
    %c0_2 = arith.constant 0 : index
    %2 = vector.load %arg2[%c0_1, %c0_2] : memref<8x16xf32, #tpu.memory_space<vmem>>, vector<8x16xf32>
    %3 = arith.truncf %2 : vector<8x16xf32> to vector<8x16xbf16>
    %c0_3 = arith.constant 0 : index
    %c0_4 = arith.constant 0 : index
    %4 = vector.load %arg3[%c0_3, %c0_4] : memref<8x1xf32, #tpu.memory_space<vmem>>, vector<8x1xf32>
    %c0_5 = arith.constant 0 : index
    %c0_6 = arith.constant 0 : index
    %5 = vector.load %arg4[%c0_5, %c0_6] : memref<16x128xbf16, #tpu.memory_space<vmem>>, vector<16x128xbf16>
    %cst = arith.constant dense<0.000000e+00> : vector<8x128xf32>
    %6 = tpu.matmul %1, %5, %cst {dimension_numbers = #tpu.dot_dimension_numbers<[1], [0], [0], [1], [0, 0, 1, 1], [], []>} : vector<8x16xbf16>, vector<16x128xbf16>, vector<8x128xf32> -> vector<8x128xf32>
    %c0_7 = arith.constant 0 : index
    %c0_8 = arith.constant 0 : index
    %7 = vector.load %arg5[%c0_7, %c0_8] : memref<16x128xbf16, #tpu.memory_space<vmem>>, vector<16x128xbf16>
    %cst_9 = arith.constant dense<0.000000e+00> : vector<8x128xf32>
    %8 = tpu.matmul %3, %7, %cst_9 {dimension_numbers = #tpu.dot_dimension_numbers<[1], [0], [0], [1], [0, 0, 1, 1], [], []>} : vector<8x16xbf16>, vector<16x128xbf16>, vector<8x128xf32> -> vector<8x128xf32>
    %9 = arith.addf %6, %8 : vector<8x128xf32>
    %c0_10 = arith.constant 0 : index
    %c0_11 = arith.constant 0 : index
    %10 = vector.load %arg6[%c0_10, %c0_11] : memref<1x128xbf16, #tpu.memory_space<vmem>>, vector<1x128xbf16>
    %11 = arith.extf %10 : vector<1x128xbf16> to vector<1x128xf32>
    %12 = vector.broadcast %4 : vector<8x1xf32> to vector<8x128xf32>
    %13 = vector.broadcast %11 : vector<1x128xf32> to vector<8x128xf32>
    %14 = arith.mulf %12, %13 : vector<8x128xf32>
    %15 = arith.addf %9, %14 : vector<8x128xf32>
    %c0_12 = arith.constant 0 : index
    %c0_13 = arith.constant 0 : index
    %16 = vector.load %arg7[%c0_12, %c0_13] : memref<1x128xf32, #tpu.memory_space<vmem>>, vector<1x128xf32>
    %17 = vector.broadcast %16 : vector<1x128xf32> to vector<8x128xf32>
    %18 = arith.addf %15, %17 : vector<8x128xf32>
    %cst_14 = arith.constant 0.00999999977 : f32
    %19 = vector.broadcast %cst_14 : f32 to vector<8x128xf32>
    %20 = arith.mulf %19, %18 : vector<8x128xf32>
    %21 = arith.maximumf %18, %20 : vector<8x128xf32>
    %22 = arith.truncf %21 : vector<8x128xf32> to vector<8x128xbf16>
    %c0_15 = arith.constant 0 : index
    %c0_16 = arith.constant 0 : index
    %23 = vector.load %arg8[%c0_15, %c0_16] : memref<128x128xbf16, #tpu.memory_space<vmem>>, vector<128x128xbf16>
    %cst_17 = arith.constant dense<0.000000e+00> : vector<8x128xf32>
    %24 = tpu.matmul %22, %23, %cst_17 {dimension_numbers = #tpu.dot_dimension_numbers<[1], [0], [0], [1], [0, 0, 1, 1], [], []>} : vector<8x128xbf16>, vector<128x128xbf16>, vector<8x128xf32> -> vector<8x128xf32>
    %c0_18 = arith.constant 0 : index
    %c0_19 = arith.constant 0 : index
    %25 = vector.load %arg9[%c0_18, %c0_19] : memref<1x128xf32, #tpu.memory_space<vmem>>, vector<1x128xf32>
    %26 = vector.broadcast %25 : vector<1x128xf32> to vector<8x128xf32>
    %27 = arith.addf %24, %26 : vector<8x128xf32>
    %cst_20 = arith.constant 0.00999999977 : f32
    %28 = vector.broadcast %cst_20 : f32 to vector<8x128xf32>
    %29 = arith.mulf %28, %27 : vector<8x128xf32>
    %30 = arith.maximumf %27, %29 : vector<8x128xf32>
    %31 = arith.truncf %30 : vector<8x128xf32> to vector<8x128xbf16>
    %c0_21 = arith.constant 0 : index
    %c0_22 = arith.constant 0 : index
    %32 = vector.load %arg10[%c0_21, %c0_22] : memref<128x128xbf16, #tpu.memory_space<vmem>>, vector<128x128xbf16>
    %cst_23 = arith.constant dense<0.000000e+00> : vector<8x128xf32>
    %33 = tpu.matmul %31, %32, %cst_23 {dimension_numbers = #tpu.dot_dimension_numbers<[1], [0], [0], [1], [0, 0, 1, 1], [], []>} : vector<8x128xbf16>, vector<128x128xbf16>, vector<8x128xf32> -> vector<8x128xf32>
    %c0_24 = arith.constant 0 : index
    %c0_25 = arith.constant 0 : index
    %34 = vector.load %arg11[%c0_24, %c0_25] : memref<1x128xf32, #tpu.memory_space<vmem>>, vector<1x128xf32>
    %35 = vector.broadcast %34 : vector<1x128xf32> to vector<8x128xf32>
    %36 = arith.addf %33, %35 : vector<8x128xf32>
    %cst_26 = arith.constant 0.00999999977 : f32
    %37 = vector.broadcast %cst_26 : f32 to vector<8x128xf32>
    %38 = arith.mulf %37, %36 : vector<8x128xf32>
    %39 = arith.maximumf %36, %38 : vector<8x128xf32>
    %40 = arith.truncf %39 : vector<8x128xf32> to vector<8x128xbf16>
    %c0_27 = arith.constant 0 : index
    %c0_28 = arith.constant 0 : index
    %41 = vector.load %arg12[%c0_27, %c0_28] : memref<128x16xbf16, #tpu.memory_space<vmem>>, vector<128x16xbf16>
    %cst_29 = arith.constant dense<0.000000e+00> : vector<8x16xf32>
    %42 = tpu.matmul %40, %41, %cst_29 {dimension_numbers = #tpu.dot_dimension_numbers<[1], [0], [0], [1], [0, 0, 1, 1], [], []>} : vector<8x128xbf16>, vector<128x16xbf16>, vector<8x16xf32> -> vector<8x16xf32>
    %c0_30 = arith.constant 0 : index
    %c0_31 = arith.constant 0 : index
    %43 = vector.load %arg13[%c0_30, %c0_31] : memref<1x16xf32, #tpu.memory_space<vmem>>, vector<1x16xf32>
    %44 = vector.broadcast %43 : vector<1x16xf32> to vector<8x16xf32>
    %45 = arith.addf %42, %44 : vector<8x16xf32>
    %c0_32 = arith.constant 0 : index
    %c0_33 = arith.constant 0 : index
    %46 = vector.load %arg14[%c0_32, %c0_33] : memref<8x16xf32, #tpu.memory_space<vmem>>, vector<8x16xf32>
    tpu.vector_store %arg14[%c0_32, %c0_33], %45 {strides = array<i32>} : memref<8x16xf32, #tpu.memory_space<vmem>>, vector<8x16xf32>,
    return
  }
  func.func @transform_0(%arg0: i32) -> (i32, i32) {
    %c0_i32 = arith.constant 0 : i32
    %c0_i32_0 = arith.constant 0 : i32
    return %arg0, %c0_i32 : i32, i32
  }
  func.func @transform_1(%arg0: i32) -> (i32, i32) {
    %c0_i32 = arith.constant 0 : i32
    %c0_i32_0 = arith.constant 0 : i32
    return %arg0, %c0_i32 : i32, i32
  }
  func.func @transform_2(%arg0: i32) -> (i32, i32) {
    %c0_i32 = arith.constant 0 : i32
    %c0_i32_0 = arith.constant 0 : i32
    return %arg0, %c0_i32 : i32, i32
  }
  func.func @transform_3(%arg0: i32) -> (i32, i32) {
    %c0_i32 = arith.constant 0 : i32
    %c0_i32_0 = arith.constant 0 : i32
    %c0_i32_1 = arith.constant 0 : i32
    return %c0_i32, %c0_i32_0 : i32, i32
  }
  func.func @transform_4(%arg0: i32) -> (i32, i32) {
    %c0_i32 = arith.constant 0 : i32
    %c0_i32_0 = arith.constant 0 : i32
    %c0_i32_1 = arith.constant 0 : i32
    return %c0_i32, %c0_i32_0 : i32, i32
  }
  func.func @transform_5(%arg0: i32) -> (i32, i32) {
    %c0_i32 = arith.constant 0 : i32
    %c0_i32_0 = arith.constant 0 : i32
    %c0_i32_1 = arith.constant 0 : i32
    return %c0_i32, %c0_i32_0 : i32, i32
  }
  func.func @transform_6(%arg0: i32) -> (i32, i32) {
    %c0_i32 = arith.constant 0 : i32
    %c0_i32_0 = arith.constant 0 : i32
    %c0_i32_1 = arith.constant 0 : i32
    return %c0_i32, %c0_i32_0 : i32, i32
  }
  func.func @transform_7(%arg0: i32) -> (i32, i32) {
    %c0_i32 = arith.constant 0 : i32
    %c0_i32_0 = arith.constant 0 : i32
    %c0_i32_1 = arith.constant 0 : i32
    return %c0_i32, %c0_i32_0 : i32, i32
  }
  func.func @transform_8(%arg0: i32) -> (i32, i32) {
    %c0_i32 = arith.constant 0 : i32
    %c0_i32_0 = arith.constant 0 : i32
    %c0_i32_1 = arith.constant 0 : i32
    return %c0_i32, %c0_i32_0 : i32, i32
  }
  func.func @transform_9(%arg0: i32) -> (i32, i32) {
    %c0_i32 = arith.constant 0 : i32
    %c0_i32_0 = arith.constant 0 : i32
    %c0_i32_1 = arith.constant 0 : i32
    return %c0_i32, %c0_i32_0 : i32, i32
  }
  func.func @transform_10(%arg0: i32) -> (i32, i32) {
    %c0_i32 = arith.constant 0 : i32
    %c0_i32_0 = arith.constant 0 : i32
    %c0_i32_1 = arith.constant 0 : i32
    return %c0_i32, %c0_i32_0 : i32, i32
  }
  func.func @transform_11(%arg0: i32) -> (i32, i32) {
    %c0_i32 = arith.constant 0 : i32
    %c0_i32_0 = arith.constant 0 : i32
    %c0_i32_1 = arith.constant 0 : i32
    return %c0_i32, %c0_i32_0 : i32, i32
  }
  func.func @transform_12(%arg0: i32) -> (i32, i32) {
    %c0_i32 = arith.constant 0 : i32
    %c0_i32_0 = arith.constant 0 : i32
    %c0_i32_1 = arith.constant 0 : i32
    return %c0_i32, %c0_i32_0 : i32, i32
  }
  func.func @transform_13(%arg0: i32) -> (i32, i32) {
    %c0_i32 = arith.constant 0 : i32
    %c0_i32_0 = arith.constant 0 : i32
    return %arg0, %c0_i32 : i32, i32
  }
}

</mosaic_0001>

<llo_original>
// kernel: tpu_custom_call.1
$region0: #{tpu_custom_call.1}
  #allocation0 [shape = 'u32[]', space=smem, size = 0x4, offset = 0x4, fixed_abs, tag = 'smem constant byte address 0x4 - core index']
  #allocation1 [shape = 'u32[144,128]{1,0:T(1,128)}', space=vmem, size = 0x12000, scoped, tag = 'internal scratch']
  %s0 = inlined_call_operand.vmem [shape: f32[8,16], index: 0, kind: input, shape index: {}]
  %s1 = inlined_call_operand.vmem [shape: f32[8,16], index: 1, kind: input, shape index: {}]
  %s2 = inlined_call_operand.vmem [shape: f32[8,1], index: 2, kind: input, shape index: {}]
  %s3 = inlined_call_operand.hbm [shape: bf16[16,128], index: 3, kind: input, shape index: {}]
  %s4 = inlined_call_operand.hbm [shape: bf16[16,128], index: 4, kind: input, shape index: {}]
  %s5 = inlined_call_operand.vmem [shape: bf16[1,128], index: 5, kind: input, shape index: {}]
  %s6 = inlined_call_operand.vmem [shape: f32[1,128], index: 6, kind: input, shape index: {}]
  %s7 = inlined_call_operand.vmem [shape: bf16[128,128], index: 7, kind: input, shape index: {}]
  %s8 = inlined_call_operand.vmem [shape: f32[1,128], index: 8, kind: input, shape index: {}]
  %s9 = inlined_call_operand.hbm [shape: bf16[128,128], index: 9, kind: input, shape index: {}]
  %s10 = inlined_call_operand.vmem [shape: f32[1,128], index: 10, kind: input, shape index: {}]
  %s11 = inlined_call_operand.vmem [shape: bf16[128,16], index: 11, kind: input, shape index: {}]
  %s12 = inlined_call_operand.vmem [shape: f32[1,16], index: 12, kind: input, shape index: {}]
  %s13 = inlined_call_operand.hbm [shape: f32[8,16], index: 13, kind: output, shape index: {}]
  %s14 = sld [smem:[#allocation0]]
  $region74: #{tpu_custom_call.1} parent=0
    _
  %s16 = ssub.s32 1, %s14
  %s17 = scalar_select 0, %s16, %s14
  $region1: #{tpu_custom_call.1} parent=0
    #allocation2 [shape = 'u8[4096]{0}', space=vmem, size = 0x1000, scoped, tag = 'input window, operand 3, single buffered']
    #allocation3 [shape = 's32[1]{0}', space=sflag, size = 0x4, scoped, tag = 'scoped memory for tpu_custom_call.1']
    #allocation4 [shape = 's32[1]{0}', space=sflag, size = 0x4, scoped, tag = 'scoped memory for tpu_custom_call.1']
    #allocation5 [shape = 'u8[4096]{0}', space=vmem, size = 0x1000, scoped, tag = 'input window, operand 4, single buffered']
    #allocation6 [shape = 's32[1]{0}', space=sflag, size = 0x4, scoped, tag = 'scoped memory for tpu_custom_call.1']
    #allocation7 [shape = 'u8[32768]{0}', space=vmem, size = 0x8000, scoped, tag = 'input window, operand 9, single buffered']
    #allocation8 [shape = 'u8[4096]{0}', space=vmem, size = 0x1000, scoped, tag = 'output window, operand 0, single buffered']
    %18 = vsyncpa [#allocation3], 0
    %19 = vsyncpa [#allocation6], 0
    %20 = vsyncpa [#allocation4], 0
    // Predicated region
    $region2: #{tpu_custom_call.1} parent=1 // pred_check
      _
    $region3: #{tpu_custom_call.1} parent=1 // pred_check_branch
      %22 = sbr.rel (0) target = $region5
    $region4: #{tpu_custom_call.1} parent=1 // pred_region
      _
    $region5: #{tpu_custom_call.1} parent=1 // pred_fallthru
      _
    // Predicated region
    $region6: #{tpu_custom_call.1} parent=1 // pred_check
      _
    $region7: #{tpu_custom_call.1} parent=1 // pred_check_branch
      %24 = sbr.rel (0) target = $region9
    $region8: #{tpu_custom_call.1} parent=1 // pred_region
      _
    $region9: #{tpu_custom_call.1} parent=1 // pred_fallthru
      _
    // Predicated region
    $region10: #{tpu_custom_call.1} parent=1 // pred_check
      _
    $region11: #{tpu_custom_call.1} parent=1 // pred_check_branch
      %26 = sbr.rel (0) target = $region13
    $region12: #{tpu_custom_call.1} parent=1 // pred_region
      _
    $region13: #{tpu_custom_call.1} parent=1 // pred_fallthru
      _
    // Predicated region
    $region14: #{tpu_custom_call.1} parent=1 // pred_check
      _
    $region15: #{tpu_custom_call.1} parent=1 // pred_check_branch
      %28 = sbr.rel (0) target = $region17
    $region16: #{tpu_custom_call.1} parent=1 // pred_region
      %s30 = ssub.s32 128, 128
      %31 = vsyncadd [#allocation3], %s30
      %s32 = sshll.u32 [#allocation2], 4
      %s33 = int_to_ptr.vmem [resolvable:$true] %s32
      %38 = dma.hbm_to_vmem [thread:$0]  %s3, 128, %s33, [#allocation3], 64, 64, 4
    $region17: #{tpu_custom_call.1} parent=1 // pred_fallthru
      _
    // Predicated region
    $region18: #{tpu_custom_call.1} parent=1 // pred_check
      _
    $region19: #{tpu_custom_call.1} parent=1 // pred_check_branch
      %40 = sbr.rel (0) target = $region21
    $region20: #{tpu_custom_call.1} parent=1 // pred_region
      %s42 = ssub.s32 128, 128
      %43 = vsyncadd [#allocation6], %s42
      %s44 = sshll.u32 [#allocation5], 4
      %s45 = int_to_ptr.vmem [resolvable:$true] %s44
      %50 = dma.hbm_to_vmem [thread:$0]  %s4, 128, %s45, [#allocation6], 64, 64, 4
    $region21: #{tpu_custom_call.1} parent=1 // pred_fallthru
      _
    // Predicated region
    $region22: #{tpu_custom_call.1} parent=1 // pred_check
      _
    $region23: #{tpu_custom_call.1} parent=1 // pred_check_branch
      %52 = sbr.rel (0) target = $region25
    $region24: #{tpu_custom_call.1} parent=1 // pred_region
      _
    $region25: #{tpu_custom_call.1} parent=1 // pred_fallthru
      _
    // Predicated region
    $region26: #{tpu_custom_call.1} parent=1 // pred_check
      _
    $region27: #{tpu_custom_call.1} parent=1 // pred_check_branch
      %54 = sbr.rel (0) target = $region29
    $region28: #{tpu_custom_call.1} parent=1 // pred_region
      _
    $region29: #{tpu_custom_call.1} parent=1 // pred_fallthru
      _
    // Predicated region
    $region30: #{tpu_custom_call.1} parent=1 // pred_check
      _
    $region31: #{tpu_custom_call.1} parent=1 // pred_check_branch
      %56 = sbr.rel (0) target = $region33
    $region32: #{tpu_custom_call.1} parent=1 // pred_region
      _
    $region33: #{tpu_custom_call.1} parent=1 // pred_fallthru
      _
    // Predicated region
    $region34: #{tpu_custom_call.1} parent=1 // pred_check
      _
    $region35: #{tpu_custom_call.1} parent=1 // pred_check_branch
      %58 = sbr.rel (0) target = $region37
    $region36: #{tpu_custom_call.1} parent=1 // pred_region
      _
    $region37: #{tpu_custom_call.1} parent=1 // pred_fallthru
      _
    // Predicated region
    $region38: #{tpu_custom_call.1} parent=1 // pred_check
      _
    $region39: #{tpu_custom_call.1} parent=1 // pred_check_branch
      %60 = sbr.rel (0) target = $region41
    $region40: #{tpu_custom_call.1} parent=1 // pred_region
      %s62 = ssub.s32 1024, 1024
      %63 = vsyncadd [#allocation6], %s62
      %s64 = sshll.u32 [#allocation7], 4
      %s65 = int_to_ptr.vmem [resolvable:$true] %s64
      %70 = dma.hbm_to_vmem [thread:$0]  %s9, 1024, %s65, [#allocation6], 64, 64, 4
    $region41: #{tpu_custom_call.1} parent=1 // pred_fallthru
      _
    // Predicated region
    $region42: #{tpu_custom_call.1} parent=1 // pred_check
      _
    $region43: #{tpu_custom_call.1} parent=1 // pred_check_branch
      %72 = sbr.rel (0) target = $region45
    $region44: #{tpu_custom_call.1} parent=1 // pred_region
      _
    $region45: #{tpu_custom_call.1} parent=1 // pred_fallthru
      _
    // Predicated region
    $region46: #{tpu_custom_call.1} parent=1 // pred_check
      _
    $region47: #{tpu_custom_call.1} parent=1 // pred_check_branch
      %74 = sbr.rel (0) target = $region49
    $region48: #{tpu_custom_call.1} parent=1 // pred_region
      _
    $region49: #{tpu_custom_call.1} parent=1 // pred_fallthru
      _
    // Predicated region
    $region50: #{tpu_custom_call.1} parent=1 // pred_check
      _
    $region51: #{tpu_custom_call.1} parent=1 // pred_check_branch
      %76 = sbr.rel (0) target = $region53
    $region52: #{tpu_custom_call.1} parent=1 // pred_region
      _
    $region53: #{tpu_custom_call.1} parent=1 // pred_fallthru
      _
    // Predicated region
    $region54: #{tpu_custom_call.1} parent=1 // pred_check
      _
    $region55: #{tpu_custom_call.1} parent=1 // pred_check_branch
      %78 = sbr.rel (0) target = $region57
    $region56: #{tpu_custom_call.1} parent=1 // pred_region
      %79 = dma.done [#allocation3], 128
    $region57: #{tpu_custom_call.1} parent=1 // pred_fallthru
      _
    // Predicated region
    $region58: #{tpu_custom_call.1} parent=1 // pred_check
      _
    $region59: #{tpu_custom_call.1} parent=1 // pred_check_branch
      %81 = sbr.rel (0) target = $region61
    $region60: #{tpu_custom_call.1} parent=1 // pred_region
      %82 = dma.done [#allocation6], 128
    $region61: #{tpu_custom_call.1} parent=1 // pred_fallthru
      _
    // Predicated region
    $region62: #{tpu_custom_call.1} parent=1 // pred_check
      _
    $region63: #{tpu_custom_call.1} parent=1 // pred_check_branch
      %84 = sbr.rel (0) target = $region65
    $region64: #{tpu_custom_call.1} parent=1 // pred_region
      %85 = dma.done [#allocation6], 1024
    $region65: #{tpu_custom_call.1} parent=1 // pred_fallthru
      _
    %v87 = vld [vmem:[%s0] sm:$0xff]
    %v88 = vpack.c.bf16 %v87, %v87
    %v89 = vld [vmem:[%s1] sm:$0xff]
    %v90 = vpack.c.bf16 %v89, %v89
    %v91 = vld [vmem:[%s2] sm:$0xff]
    %v92 = vld [vmem:[#allocation2] sm:$0xf]
    %v93 = vld [vmem:[#allocation2 + $0x4] sm:$0xf]
    %v94 = vld [vmem:[#allocation5] sm:$0xf]
    %v95 = vld [vmem:[#allocation5 + $0x4] sm:$0xf]
    %v98 = vunpack.c.l.b16 %v94
    %v99 = vunpack.c.l.b16 %v95
    %v100 = vpack.c.b16 %v99, %v98
    %vm102 = vcmask 130048
    %v104 = vsel %vm102, %v90, 0
    %106 = vmatprep.subr.bf16.mxu0 0
    %107 = vmatpush1.bf16.msra.mxu0 0
    %108 = vmatprep.subr.bf16.mxu0 0
    %109 = vmatpush1.bf16.msra.mxu0 0
    %110 = vmatprep.subr.bf16.mxu0 0
    %111 = vmatpush1.bf16.msra.mxu0 0
    %112 = vmatprep.subr.bf16.mxu0 0
    %113 = vmatpush1.bf16.msra.mxu0 0
    %114 = vmatprep.subr.bf16.mxu0 0
    %115 = vmatpush1.bf16.msra.mxu0 0
    %116 = vmatprep.subr.bf16.mxu0 0
    %117 = vmatpush1.bf16.msra.mxu0 0
    %118 = vmatprep.subr.bf16.mxu0 0
    %119 = vmatpush1.bf16.msra.mxu0 0
    %120 = vmatprep.subr.bf16.mxu0 0
    %121 = vmatpush1.bf16.msra.mxu0 %v100
    %122 = vmatprep.subr.bf16.mxu0 0
    %123 = vmatpush2.bf16.msra.mxu0 0
    %124 = vmatprep.subr.bf16.mxu0 0
    %125 = vmatpush2.bf16.msra.mxu0 0
    %126 = vmatprep.subr.bf16.mxu0 0
    %127 = vmatpush2.bf16.msra.mxu0 0
    %128 = vmatprep.subr.bf16.mxu0 0
    %129 = vmatpush2.bf16.msra.mxu0 0
    %130 = vmatprep.subr.bf16.mxu0 0
    %131 = vmatpush2.bf16.msra.mxu0 0
    %132 = vmatprep.subr.bf16.mxu0 0
    %133 = vmatpush2.bf16.msra.mxu0 0
    %134 = vmatprep.subr.bf16.mxu0 0
    %135 = vmatpush2.bf16.msra.mxu0 0
    %136 = vmatprep.subr.bf16.mxu0 0
    %137 = vmatpush2.bf16.msra.mxu0 0
    %138 = vmatprep.mubr.bf16.mxu0 0
    %139 = vmatmul.mubr.bf16.gmra.mxu0 %v104
    %v140 = vpop.f32.mrf.mxu0
    %v141 = vadd.f32 0.0, %v140
    %v142 = vpop.f32.mrf.mxu0
    %v143 = vpop.f32.mrf.mxu0
    %v144 = vpop.f32.mrf.mxu0
    %145 = vdwg.mxu0
    %v148 = vunpack.c.l.b16 %v92
    %v149 = vunpack.c.l.b16 %v93
    %v150 = vpack.c.b16 %v149, %v148
    %v153 = vsel %vm102, %v88, 0
    %155 = vmatprep.subr.bf16.mxu0 0
    %156 = vmatpush1.bf16.msra.mxu0 0
    %157 = vmatprep.subr.bf16.mxu0 0
    %158 = vmatpush1.bf16.msra.mxu0 0
    %159 = vmatprep.subr.bf16.mxu0 0
    %160 = vmatpush1.bf16.msra.mxu0 0
    %161 = vmatprep.subr.bf16.mxu0 0
    %162 = vmatpush1.bf16.msra.mxu0 0
    %163 = vmatprep.subr.bf16.mxu0 0
    %164 = vmatpush1.bf16.msra.mxu0 0
    %165 = vmatprep.subr.bf16.mxu0 0
    %166 = vmatpush1.bf16.msra.mxu0 0
    %167 = vmatprep.subr.bf16.mxu0 0
    %168 = vmatpush1.bf16.msra.mxu0 0
    %169 = vmatprep.subr.bf16.mxu0 0
    %170 = vmatpush1.bf16.msra.mxu0 %v150
    %171 = vmatprep.subr.bf16.mxu0 0
    %172 = vmatpush2.bf16.msra.mxu0 0
    %173 = vmatprep.subr.bf16.mxu0 0
    %174 = vmatpush2.bf16.msra.mxu0 0
    %175 = vmatprep.subr.bf16.mxu0 0
    %176 = vmatpush2.bf16.msra.mxu0 0
    %177 = vmatprep.subr.bf16.mxu0 0
    %178 = vmatpush2.bf16.msra.mxu0 0
    %179 = vmatprep.subr.bf16.mxu0 0
    %180 = vmatpush2.bf16.msra.mxu0 0
    %181 = vmatprep.subr.bf16.mxu0 0
    %182 = vmatpush2.bf16.msra.mxu0 0
    %183 = vmatprep.subr.bf16.mxu0 0
    %184 = vmatpush2.bf16.msra.mxu0 0
    %185 = vmatprep.subr.bf16.mxu0 0
    %186 = vmatpush2.bf16.msra.mxu0 0
    %187 = vmatprep.mubr.bf16.mxu0 0
    %188 = vmatmul.mubr.bf16.gmra.mxu0 %v153
    %v189 = vpop.f32.mrf.mxu0
    %v190 = vadd.f32 %v141, %v189
    %v191 = vpop.f32.mrf.mxu0
    %v192 = vpop.f32.mrf.mxu0
    %v193 = vpop.f32.mrf.mxu0
    %194 = vdwg.mxu0
    %v195 = vld [vmem:[%s5] sm:$0x1]
    %v196 = vunpack.c.l.bf16 %v195
    %198 = vset.pattern.permute.xlu0 0
    %199 = vperm.xlu0 %198, %v91
    %v200 = vpop.permute.xlu0 %199
    %v202 = vlaneseq
    %v203 = vshrl.u32 %v202, 7
    %v204 = vsub.s32 0, %v203
    %v205 = vrot.slane %v196, %v204
    %v206 = vmul.f32 %v200, %v205
    %v207 = vadd.f32 %v190, %v206
    %v208 = vld [vmem:[%s6] sm:$0x1]
    %v210 = vlaneseq
    %v211 = vshrl.u32 %v210, 7
    %v212 = vsub.s32 0, %v211
    %v213 = vrot.slane %v208, %v212
    %v215 = vadd.f32 %v207, %v213
    %v216 = vmul.f32 %v215, 0.01
    %v217 = vmax.f32 %v215, %v216
    %v218 = vpack.c.bf16 %v217, %v217
    %v219 = vld [vmem:[%s7] sm:$0xf]
    %v220 = vld [vmem:[%s7 + $0x4] sm:$0xf]
    %v221 = vld [vmem:[%s7 + $0x8] sm:$0xf]
    %v222 = vld [vmem:[%s7 + $0xc] sm:$0xf]
    %v223 = vld [vmem:[%s7 + $0x10] sm:$0xf]
    %v224 = vld [vmem:[%s7 + $0x14] sm:$0xf]
    %v225 = vld [vmem:[%s7 + $0x18] sm:$0xf]
    %v226 = vld [vmem:[%s7 + $0x1c] sm:$0xf]
    %v227 = vld [vmem:[%s7 + $0x20] sm:$0xf]
    %v228 = vld [vmem:[%s7 + $0x24] sm:$0xf]
    %v229 = vld [vmem:[%s7 + $0x28] sm:$0xf]
    %v230 = vld [vmem:[%s7 + $0x2c] sm:$0xf]
    %v231 = vld [vmem:[%s7 + $0x30] sm:$0xf]
    %v232 = vld [vmem:[%s7 + $0x34] sm:$0xf]
    %v233 = vld [vmem:[%s7 + $0x38] sm:$0xf]
    %v234 = vld [vmem:[%s7 + $0x3c] sm:$0xf]
    %v235 = vld [vmem:[%s8] sm:$0x1]
    %v237 = vlaneseq
    %v238 = vshrl.u32 %v237, 7
    %v239 = vsub.s32 0, %v238
    %v240 = vrot.slane %v235, %v239
    %v258 = vunpack.c.l.b16 %v219
    %v259 = vunpack.c.l.b16 %v220
    %v260 = vunpack.c.l.b16 %v221
    %v261 = vunpack.c.l.b16 %v222
    %v262 = vunpack.c.l.b16 %v223
    %v263 = vunpack.c.l.b16 %v224
    %v264 = vunpack.c.l.b16 %v225
    %v265 = vunpack.c.l.b16 %v226
    %v266 = vunpack.c.l.b16 %v227
    %v267 = vunpack.c.l.b16 %v228
    %v268 = vunpack.c.l.b16 %v229
    %v269 = vunpack.c.l.b16 %v230
    %v270 = vunpack.c.l.b16 %v231
    %v271 = vunpack.c.l.b16 %v232
    %v272 = vunpack.c.l.b16 %v233
    %v273 = vunpack.c.l.b16 %v234
    %v274 = vpack.c.b16 %v259, %v258
    %v275 = vpack.c.b16 %v261, %v260
    %v276 = vpack.c.b16 %v263, %v262
    %v277 = vpack.c.b16 %v265, %v264
    %v278 = vpack.c.b16 %v267, %v266
    %v279 = vpack.c.b16 %v269, %v268
    %v280 = vpack.c.b16 %v271, %v270
    %v281 = vpack.c.b16 %v273, %v272
    %290 = vmatprep.subr.bf16.mxu0 0
    %291 = vmatpush1.bf16.msra.mxu0 %v281
    %292 = vmatprep.subr.bf16.mxu0 0
    %293 = vmatpush1.bf16.msra.mxu0 %v280
    %294 = vmatprep.subr.bf16.mxu0 0
    %295 = vmatpush1.bf16.msra.mxu0 %v279
    %296 = vmatprep.subr.bf16.mxu0 0
    %297 = vmatpush1.bf16.msra.mxu0 %v278
    %298 = vmatprep.subr.bf16.mxu0 0
    %299 = vmatpush1.bf16.msra.mxu0 %v277
    %300 = vmatprep.subr.bf16.mxu0 0
    %301 = vmatpush1.bf16.msra.mxu0 %v276
    %302 = vmatprep.subr.bf16.mxu0 0
    %303 = vmatpush1.bf16.msra.mxu0 %v275
    %304 = vmatprep.subr.bf16.mxu0 0
    %305 = vmatpush1.bf16.msra.mxu0 %v274
    %306 = vmatprep.subr.bf16.mxu0 0
    %307 = vmatpush2.bf16.msra.mxu0 0
    %308 = vmatprep.subr.bf16.mxu0 0
    %309 = vmatpush2.bf16.msra.mxu0 0
    %310 = vmatprep.subr.bf16.mxu0 0
    %311 = vmatpush2.bf16.msra.mxu0 0
    %312 = vmatprep.subr.bf16.mxu0 0
    %313 = vmatpush2.bf16.msra.mxu0 0
    %314 = vmatprep.subr.bf16.mxu0 0
    %315 = vmatpush2.bf16.msra.mxu0 0
    %316 = vmatprep.subr.bf16.mxu0 0
    %317 = vmatpush2.bf16.msra.mxu0 0
    %318 = vmatprep.subr.bf16.mxu0 0
    %319 = vmatpush2.bf16.msra.mxu0 0
    %320 = vmatprep.subr.bf16.mxu0 0
    %321 = vmatpush2.bf16.msra.mxu0 0
    %322 = vmatprep.mubr.bf16.mxu0 0
    %323 = vmatmul.mubr.bf16.gmra.mxu0 %v218
    %v324 = vpop.f32.mrf.mxu0
    %v325 = vadd.f32 %v240, %v324
    %v326 = vpop.f32.mrf.mxu0
    %v327 = vpop.f32.mrf.mxu0
    %v328 = vpop.f32.mrf.mxu0
    %329 = vdwg.mxu0
    %v330 = vmul.f32 %v325, 0.01
    %v331 = vmax.f32 %v325, %v330
    %v332 = vpack.c.bf16 %v331, %v331
    %v333 = vld [vmem:[#allocation7] sm:$0xf]
    %v334 = vld [vmem:[#allocation7 + $0x4] sm:$0xf]
    %v335 = vld [vmem:[#allocation7 + $0x8] sm:$0xf]
    %v336 = vld [vmem:[#allocation7 + $0xc] sm:$0xf]
    %v337 = vld [vmem:[#allocation7 + $0x10] sm:$0xf]
    %v338 = vld [vmem:[#allocation7 + $0x14] sm:$0xf]
    %v339 = vld [vmem:[#allocation7 + $0x18] sm:$0xf]
    %v340 = vld [vmem:[#allocation7 + $0x1c] sm:$0xf]
    %v341 = vld [vmem:[#allocation7 + $0x20] sm:$0xf]
    %v342 = vld [vmem:[#allocation7 + $0x24] sm:$0xf]
    %v343 = vld [vmem:[#allocation7 + $0x28] sm:$0xf]
    %v344 = vld [vmem:[#allocation7 + $0x2c] sm:$0xf]
    %v345 = vld [vmem:[#allocation7 + $0x30] sm:$0xf]
    %v346 = vld [vmem:[#allocation7 + $0x34] sm:$0xf]
    %v347 = vld [vmem:[#allocation7 + $0x38] sm:$0xf]
    %v348 = vld [vmem:[#allocation7 + $0x3c] sm:$0xf]
    %v349 = vld [vmem:[%s10] sm:$0x1]
    %v351 = vlaneseq
    %v352 = vshrl.u32 %v351, 7
    %v353 = vsub.s32 0, %v352
    %v354 = vrot.slane %v349, %v353
    %v372 = vunpack.c.l.b16 %v333
    %v373 = vunpack.c.l.b16 %v334
    %v374 = vunpack.c.l.b16 %v335
    %v375 = vunpack.c.l.b16 %v336
    %v376 = vunpack.c.l.b16 %v337
    %v377 = vunpack.c.l.b16 %v338
    %v378 = vunpack.c.l.b16 %v339
    %v379 = vunpack.c.l.b16 %v340
    %v380 = vunpack.c.l.b16 %v341
    %v381 = vunpack.c.l.b16 %v342
    %v382 = vunpack.c.l.b16 %v343
    %v383 = vunpack.c.l.b16 %v344
    %v384 = vunpack.c.l.b16 %v345
    %v385 = vunpack.c.l.b16 %v346
    %v386 = vunpack.c.l.b16 %v347
    %v387 = vunpack.c.l.b16 %v348
    %v388 = vpack.c.b16 %v373, %v372
    %v389 = vpack.c.b16 %v375, %v374
    %v390 = vpack.c.b16 %v377, %v376
    %v391 = vpack.c.b16 %v379, %v378
    %v392 = vpack.c.b16 %v381, %v380
    %v393 = vpack.c.b16 %v383, %v382
    %v394 = vpack.c.b16 %v385, %v384
    %v395 = vpack.c.b16 %v387, %v386
    %404 = vmatprep.subr.bf16.mxu0 0
    %405 = vmatpush1.bf16.msra.mxu0 %v395
    %406 = vmatprep.subr.bf16.mxu0 0
    %407 = vmatpush1.bf16.msra.mxu0 %v394
    %408 = vmatprep.subr.bf16.mxu0 0
    %409 = vmatpush1.bf16.msra.mxu0 %v393
    %410 = vmatprep.subr.bf16.mxu0 0
    %411 = vmatpush1.bf16.msra.mxu0 %v392
    %412 = vmatprep.subr.bf16.mxu0 0
    %413 = vmatpush1.bf16.msra.mxu0 %v391
    %414 = vmatprep.subr.bf16.mxu0 0
    %415 = vmatpush1.bf16.msra.mxu0 %v390
    %416 = vmatprep.subr.bf16.mxu0 0
    %417 = vmatpush1.bf16.msra.mxu0 %v389
    %418 = vmatprep.subr.bf16.mxu0 0
    %419 = vmatpush1.bf16.msra.mxu0 %v388
    %420 = vmatprep.subr.bf16.mxu0 0
    %421 = vmatpush2.bf16.msra.mxu0 0
    %422 = vmatprep.subr.bf16.mxu0 0
    %423 = vmatpush2.bf16.msra.mxu0 0
    %424 = vmatprep.subr.bf16.mxu0 0
    %425 = vmatpush2.bf16.msra.mxu0 0
    %426 = vmatprep.subr.bf16.mxu0 0
    %427 = vmatpush2.bf16.msra.mxu0 0
    %428 = vmatprep.subr.bf16.mxu0 0
    %429 = vmatpush2.bf16.msra.mxu0 0
    %430 = vmatprep.subr.bf16.mxu0 0
    %431 = vmatpush2.bf16.msra.mxu0 0
    %432 = vmatprep.subr.bf16.mxu0 0
    %433 = vmatpush2.bf16.msra.mxu0 0
    %434 = vmatprep.subr.bf16.mxu0 0
    %435 = vmatpush2.bf16.msra.mxu0 0
    %436 = vmatprep.mubr.bf16.mxu0 0
    %437 = vmatmul.mubr.bf16.gmra.mxu0 %v332
    %v438 = vpop.f32.mrf.mxu0
    %v439 = vadd.f32 %v354, %v438
    %v440 = vpop.f32.mrf.mxu0
    %v441 = vpop.f32.mrf.mxu0
    %v442 = vpop.f32.mrf.mxu0
    %443 = vdwg.mxu0
    %v444 = vmul.f32 %v439, 0.01
    %v445 = vmax.f32 %v439, %v444
    %v446 = vpack.c.bf16 %v445, %v445
    %v447 = vld [vmem:[%s11] sm:$0xf]
    %v448 = vld [vmem:[%s11 + $0x4] sm:$0xf]
    %v449 = vld [vmem:[%s11 + $0x8] sm:$0xf]
    %v450 = vld [vmem:[%s11 + $0xc] sm:$0xf]
    %v451 = vld [vmem:[%s11 + $0x10] sm:$0xf]
    %v452 = vld [vmem:[%s11 + $0x14] sm:$0xf]
    %v453 = vld [vmem:[%s11 + $0x18] sm:$0xf]
    %v454 = vld [vmem:[%s11 + $0x1c] sm:$0xf]
    %v455 = vld [vmem:[%s11 + $0x20] sm:$0xf]
    %v456 = vld [vmem:[%s11 + $0x24] sm:$0xf]
    %v457 = vld [vmem:[%s11 + $0x28] sm:$0xf]
    %v458 = vld [vmem:[%s11 + $0x2c] sm:$0xf]
    %v459 = vld [vmem:[%s11 + $0x30] sm:$0xf]
    %v460 = vld [vmem:[%s11 + $0x34] sm:$0xf]
    %v461 = vld [vmem:[%s11 + $0x38] sm:$0xf]
    %v462 = vld [vmem:[%s11 + $0x3c] sm:$0xf]
    %v463 = vld [vmem:[%s12] sm:$0x1]
    %v465 = vlaneseq
    %v466 = vshrl.u32 %v465, 7
    %v467 = vsub.s32 0, %v466
    %v468 = vrot.slane %v463, %v467
    %v486 = vunpack.c.l.b16 %v447
    %v487 = vunpack.c.l.b16 %v448
    %v488 = vunpack.c.l.b16 %v449
    %v489 = vunpack.c.l.b16 %v450
    %v490 = vunpack.c.l.b16 %v451
    %v491 = vunpack.c.l.b16 %v452
    %v492 = vunpack.c.l.b16 %v453
    %v493 = vunpack.c.l.b16 %v454
    %v494 = vunpack.c.l.b16 %v455
    %v495 = vunpack.c.l.b16 %v456
    %v496 = vunpack.c.l.b16 %v457
    %v497 = vunpack.c.l.b16 %v458
    %v498 = vunpack.c.l.b16 %v459
    %v499 = vunpack.c.l.b16 %v460
    %v500 = vunpack.c.l.b16 %v461
    %v501 = vunpack.c.l.b16 %v462
    %v502 = vpack.c.b16 %v487, %v486
    %v503 = vpack.c.b16 %v489, %v488
    %v504 = vpack.c.b16 %v491, %v490
    %v505 = vpack.c.b16 %v493, %v492
    %v506 = vpack.c.b16 %v495, %v494
    %v507 = vpack.c.b16 %v497, %v496
    %v508 = vpack.c.b16 %v499, %v498
    %v509 = vpack.c.b16 %v501, %v500
    %518 = vmatprep.subr.bf16.mxu0 0
    %519 = vmatpush1.bf16.msra.mxu0 %v509
    %520 = vmatprep.subr.bf16.mxu0 0
    %521 = vmatpush1.bf16.msra.mxu0 %v508
    %522 = vmatprep.subr.bf16.mxu0 0
    %523 = vmatpush1.bf16.msra.mxu0 %v507
    %524 = vmatprep.subr.bf16.mxu0 0
    %525 = vmatpush1.bf16.msra.mxu0 %v506
    %526 = vmatprep.subr.bf16.mxu0 0
    %527 = vmatpush1.bf16.msra.mxu0 %v505
    %528 = vmatprep.subr.bf16.mxu0 0
    %529 = vmatpush1.bf16.msra.mxu0 %v504
    %530 = vmatprep.subr.bf16.mxu0 0
    %531 = vmatpush1.bf16.msra.mxu0 %v503
    %532 = vmatprep.subr.bf16.mxu0 0
    %533 = vmatpush1.bf16.msra.mxu0 %v502
    %534 = vmatprep.subr.bf16.mxu0 0
    %535 = vmatpush2.bf16.msra.mxu0 0
    %536 = vmatprep.subr.bf16.mxu0 0
    %537 = vmatpush2.bf16.msra.mxu0 0
    %538 = vmatprep.subr.bf16.mxu0 0
    %539 = vmatpush2.bf16.msra.mxu0 0
    %540 = vmatprep.subr.bf16.mxu0 0
    %541 = vmatpush2.bf16.msra.mxu0 0
    %542 = vmatprep.subr.bf16.mxu0 0
    %543 = vmatpush2.bf16.msra.mxu0 0
    %544 = vmatprep.subr.bf16.mxu0 0
    %545 = vmatpush2.bf16.msra.mxu0 0
    %546 = vmatprep.subr.bf16.mxu0 0
    %547 = vmatpush2.bf16.msra.mxu0 0
    %548 = vmatprep.subr.bf16.mxu0 0
    %549 = vmatpush2.bf16.msra.mxu0 0
    %550 = vmatprep.mubr.bf16.mxu0 0
    %551 = vmatmul.mubr.bf16.gmra.mxu0 %v446
    %v552 = vpop.f32.mrf.mxu0
    %v553 = vadd.f32 %v468, %v552
    %v554 = vpop.f32.mrf.mxu0
    %v555 = vpop.f32.mrf.mxu0
    %v556 = vpop.f32.mrf.mxu0
    %557 = vdwg.mxu0
    %558 = vst.msk [vmem:[#allocation8] sm:$0xff] %vm102, %v553
    // Predicated region
    $region66: #{tpu_custom_call.1} parent=1 // pred_check
      _
    $region67: #{tpu_custom_call.1} parent=1 // pred_check_branch
      %560 = sbr.rel (0) target = $region69
    $region68: #{tpu_custom_call.1} parent=1 // pred_region
      %s562 = ssub.s32 128, 128
      %563 = vsyncadd [#allocation4], %s562
      %s565 = sshll.u32 [#allocation8], 4
      %s566 = int_to_ptr.vmem [resolvable:$true] %s565
      %568 = dma.vmem_to_hbm [thread:$0]  %s566, 128, %s13, [#allocation4]
    $region69: #{tpu_custom_call.1} parent=1 // pred_fallthru
      _
    // Predicated region
    $region70: #{tpu_custom_call.1} parent=1 // pred_check
      _
    $region71: #{tpu_custom_call.1} parent=1 // pred_check_branch
      %570 = sbr.rel (0) target = $region73
    $region72: #{tpu_custom_call.1} parent=1 // pred_region
      %571 = dma.done [#allocation4], 128
    $region73: #{tpu_custom_call.1} parent=1 // pred_fallthru
      _
    %572 = vsyncpa [#allocation3], 1
    %573 = vsyncpa [#allocation6], 1
    %574 = vsyncpa [#allocation4], 1

</llo_original>
